<compile_context>
chip_gen: v5e
topology: v5e:2x2
jax: 0.10.0
libtpu: 0.0.40
codegen_flags: <defaults>
</compile_context>

<pallas_src>
import math

import jax
import jax.numpy as jnp
from jax.experimental import pallas as pl
from jax.experimental.pallas import tpu as pltpu


def _pick_tile(n, target, mult):
    """Largest d <= target with n % d == 0 and d % mult == 0; else full extent n."""
    if n <= target:
        return n
    for d in range(target, 0, -1):
        if n % d == 0 and d % mult == 0:
            return d
    return n


def gcn_kernel(text_ref, adjt_ref, dep_ref, w_ref, bias_ref, out_ref, acc_ref):
    # text_ref: (1, TILE_I, F)          text[b, i_tile, :]
    # adjt_ref: (1, TILE_I, TILE_J)     adj[b, j_tile, i_tile] transposed -> [i, j]
    # dep_ref:  (1, TILE_I, TILE_J, F)  dep_embed[b, i_tile, j_tile, :]
    # w_ref:    (F, O),  bias_ref: (1, O)
    # out_ref:  (1, TILE_J, O)          lane-dense output tile
    # acc_ref:  (TILE_J, F) f32 scratch, resident across the i reduction axis
    i = pl.program_id(2)

    @pl.when(i == 0)
    def _init():
        acc_ref[...] = jnp.zeros_like(acc_ref)

    text = text_ref[0].astype(jnp.float32)          # (TI, F)
    adjt = adjt_ref[0].astype(jnp.float32)          # (TI, TJ)
    dep = dep_ref[0].astype(jnp.float32)            # (TI, TJ, F)

    # acc[j, f] += sum_i adj[j, i] * (text[i, f] + dep[i, j, f])   (VPU MAC;
    # the kernel is HBM-bound on dep, so the extra VPU work is hidden.)
    val = text[:, None, :] + dep                    # (TI, TJ, F)
    acc_ref[...] += jnp.sum(adjt[:, :, None] * val, axis=0)

    @pl.when(i == pl.num_programs(2) - 1)
    def _finalize():
        # One MXU-shaped projection per j-tile: (TILE_J, F) @ (F, O).
        proj = jnp.dot(acc_ref[...], w_ref[...].astype(jnp.float32),
                       preferred_element_type=jnp.float32)
        proj = proj + bias_ref[...].astype(jnp.float32)
        out_ref[0] = jnp.maximum(proj, 0.0).astype(out_ref.dtype)


def graph_convolution(text, adj, dep_embed, weight, bias=None):
    B, L, F = text.shape
    O = weight.shape[1]
    if bias is None:
        bias = jnp.zeros((O,), dtype=weight.dtype)

    # TILE_J: output rows per step (lane/sublane friendly: multiple of 128 or
    # full L).  TILE_I: reduction rows per step (multiple of 8 or full L) --
    # kept small so dep tiles + temps fit VMEM across v5e/v6e/v7x.
    tile_j = _pick_tile(L, 128, 128)
    tile_i = _pick_tile(L, 8, 8)

    # Only the small adjacency (B*L*L) is transposed; dep_embed (B*L*L*F, the
    # dominant HBM tensor) is consumed in its natural layout -- no extra pass.
    adj_t = jnp.swapaxes(adj, 1, 2)                  # (B, L_i, L_j)
    bias_r = bias.reshape(1, O)

    grid = (B, L // tile_j, L // tile_i)

    out = pl.pallas_call(
        gcn_kernel,
        out_shape=jax.ShapeDtypeStruct((B, L, O), text.dtype),
        grid_spec=pltpu.PrefetchScalarGridSpec(
            num_scalar_prefetch=0,
            grid=grid,
            in_specs=[
                pl.BlockSpec((1, tile_i, F), lambda b, j, i: (b, i, 0)),       # text
                pl.BlockSpec((1, tile_i, tile_j), lambda b, j, i: (b, i, j)),  # adj^T
                pl.BlockSpec((1, tile_i, tile_j, F),
                             lambda b, j, i: (b, i, j, 0)),                    # dep
                pl.BlockSpec((F, O), lambda b, j, i: (0, 0)),                  # weight
                pl.BlockSpec((1, O), lambda b, j, i: (0, 0)),                  # bias
            ],
            out_specs=pl.BlockSpec((1, tile_j, O), lambda b, j, i: (b, j, 0)),
            scratch_shapes=[pltpu.VMEM((tile_j, F), jnp.float32)],
        ),
        compiler_params=pltpu.CompilerParams(
            dimension_semantics=("parallel", "parallel", "arbitrary"),
            vmem_limit_bytes=48 * 1024 * 1024,   # safe on v7x's 64 MiB VMEM too
        ),
    )(text, adj_t, dep_embed, weight, bias_r)
    return out


def gcn_reference(text, adj, dep_embed, weight, bias):
    """Pure-JAX reference mirroring the PyTorch forward."""
    val_sum = text[:, :, None, :] + dep_embed                              # (B,L,L,F)
    hidden = jnp.einsum("bijf,fo->bijo", val_sum.astype(jnp.float32),
                        weight.astype(jnp.float32))                        # (B,L,L,O)
    out = jnp.einsum("bji,bijo->bjo", adj.astype(jnp.float32), hidden)     # (B,L,O)
    out = out + bias
    return jax.nn.relu(out).astype(text.dtype)


if __name__ == "__main__":
    def run_case(B, L, F, O, key, atol, rtol):
        k1, k2, k3, k4, k5 = jax.random.split(key, 5)
        text = jax.random.normal(k1, (B, L, F), jnp.float32)
        adj = (jax.random.uniform(k2, (B, L, L)) > 0.5).astype(jnp.float32)
        dep_embed = 0.1 * jax.random.normal(k3, (B, L, L, F), jnp.float32)
        # Parameter init matching reset_parameters(): kaiming_uniform_(a=sqrt(5))
        # on (F, O) and bias ~ U(-1/sqrt(fan_in), 1/sqrt(fan_in)) with torch
        # fan_in = weight.size(1) = O.
        bound = 1.0 / math.sqrt(O)
        weight = jax.random.uniform(k4, (F, O), jnp.float32, -bound, bound)
        bias = jax.random.uniform(k5, (O,), jnp.float32, -bound, bound)

        out = jax.block_until_ready(
            graph_convolution(text, adj, dep_embed, weight, bias))
        ref = gcn_reference(text, adj, dep_embed, weight, bias)
        assert out.shape == (B, L, O), out.shape
        err = float(jnp.max(jnp.abs(out - ref)))
        assert jnp.allclose(out, ref, atol=atol, rtol=rtol), err

    key = jax.random.PRNGKey(0)
    k_small, k_big = jax.random.split(key)
    # Small demo shape (single tile in every dimension).
    run_case(2, 8, 32, 32, k_small, 1e-4, 1e-4)
    # Moderately larger shape that exercises j-blocking (2 j-tiles) and the
    # i-reduction accumulator (32 i-steps).
    run_case(1, 256, 128, 128, k_big, 2e-3, 2e-3)
    print("KERNEL_OK")
</pallas_src>

<mosaic_0001>
module attributes {stable_mosaic.version = 11 : i64} {
  func.func @gcn_kernel(%arg0: i32, %arg1: i32, %arg2: i32, %arg3: memref<1x8x32xf32, #tpu.memory_space<vmem>>, %arg4: memref<1x8x8xf32, #tpu.memory_space<vmem>>, %arg5: memref<1x8x8x32xf32, #tpu.memory_space<vmem>>, %arg6: memref<32x32xf32, #tpu.memory_space<vmem>>, %arg7: memref<1x32xf32, #tpu.memory_space<vmem>>, %arg8: memref<1x8x32xf32, #tpu.memory_space<vmem>>, %arg9: memref<8x32xf32, #tpu.memory_space<vmem>>) attributes {dimension_semantics = [#tpu.dimension_semantics<parallel>, #tpu.dimension_semantics<parallel>, #tpu.dimension_semantics<arbitrary>], iteration_bounds = array<i64: 2, 1, 1>, scalar_prefetch = 0 : i64, scratch_operands = 1 : i64, tpu.core_type = #tpu.core_type<tc>, window_params = [{transform_indices = @transform_0, window_bounds = array<i64: 1, 8, 32>}, {transform_indices = @transform_1, window_bounds = array<i64: 1, 8, 8>}, {transform_indices = @transform_2, window_bounds = array<i64: 1, 8, 8, 32>}, {pipeline_mode = #tpu.pipeline_mode<synchronous>, transform_indices = @transform_3, window_bounds = array<i64: 32, 32>}, {pipeline_mode = #tpu.pipeline_mode<synchronous>, transform_indices = @transform_4, window_bounds = array<i64: 1, 32>}, {transform_indices = @transform_5, window_bounds = array<i64: 1, 8, 32>}]} {
    %c0_i32 = arith.constant 0 : i32
    %0 = arith.cmpi eq, %arg2, %c0_i32 : i32
    %1 = arith.extui %0 : i1 to i32
    %c0_i32_0 = arith.constant 0 : i32
    %2 = arith.cmpi ne, %1, %c0_i32_0 : i32
    scf.if %2 {
      %cst_16 = arith.constant 0.000000e+00 : f32
      %22 = vector.broadcast %cst_16 : f32 to vector<8x32xf32>
      %c0_17 = arith.constant 0 : index
      %c0_18 = arith.constant 0 : index
      %23 = vector.load %arg9[%c0_17, %c0_18] : memref<8x32xf32, #tpu.memory_space<vmem>>, vector<8x32xf32>
      tpu.vector_store %arg9[%c0_17, %c0_18], %22 {strides = array<i32>} : memref<8x32xf32, #tpu.memory_space<vmem>>, vector<8x32xf32>,
    } else {
    }
    %c0 = arith.constant 0 : index
    %c0_1 = arith.constant 0 : index
    %c0_2 = arith.constant 0 : index
    %3 = vector.load %arg3[%c0, %c0_1, %c0_2] : memref<1x8x32xf32, #tpu.memory_space<vmem>>, vector<1x8x32xf32>
    %4 = vector.shape_cast %3 : vector<1x8x32xf32> to vector<8x32xf32>
    %c0_3 = arith.constant 0 : index
    %c0_4 = arith.constant 0 : index
    %c0_5 = arith.constant 0 : index
    %5 = vector.load %arg4[%c0_3, %c0_4, %c0_5] : memref<1x8x8xf32, #tpu.memory_space<vmem>>, vector<1x8x8xf32>
    %6 = vector.shape_cast %5 : vector<1x8x8xf32> to vector<8x8xf32>
    %c0_6 = arith.constant 0 : index
    %c0_7 = arith.constant 0 : index
    %c0_8 = arith.constant 0 : index
    %c0_9 = arith.constant 0 : index
    %7 = vector.load %arg5[%c0_6, %c0_7, %c0_8, %c0_9] : memref<1x8x8x32xf32, #tpu.memory_space<vmem>>, vector<1x8x8x32xf32>
    %8 = vector.shape_cast %7 : vector<1x8x8x32xf32> to vector<8x8x32xf32>
    %9 = vector.shape_cast %4 : vector<8x32xf32> to vector<8x1x32xf32>
    %10 = vector.broadcast %9 : vector<8x1x32xf32> to vector<8x8x32xf32>
    %11 = arith.addf %10, %8 : vector<8x8x32xf32>
    %c0_10 = arith.constant 0 : index
    %c0_11 = arith.constant 0 : index
    %12 = vector.load %arg9[%c0_10, %c0_11] : memref<8x32xf32, #tpu.memory_space<vmem>>, vector<8x32xf32>
    %13 = vector.shape_cast %6 : vector<8x8xf32> to vector<8x8x1xf32>
    %14 = vector.broadcast %13 : vector<8x8x1xf32> to vector<8x8x32xf32>
    %15 = arith.mulf %14, %11 : vector<8x8x32xf32>
    %cst = arith.constant dense<0.000000e+00> : vector<8x32xf32>
    %16 = vector.multi_reduction <add>, %15, %cst [0] : vector<8x8x32xf32> to vector<8x32xf32>
    %17 = arith.addf %12, %16 : vector<8x32xf32>
    %c0_12 = arith.constant 0 : index
    %c0_13 = arith.constant 0 : index
    %18 = vector.load %arg9[%c0_12, %c0_13] : memref<8x32xf32, #tpu.memory_space<vmem>>, vector<8x32xf32>
    tpu.vector_store %arg9[%c0_12, %c0_13], %17 {strides = array<i32>} : memref<8x32xf32, #tpu.memory_space<vmem>>, vector<8x32xf32>,
    %c0_i32_14 = arith.constant 0 : i32
    %19 = arith.cmpi eq, %arg2, %c0_i32_14 : i32
    %20 = arith.extui %19 : i1 to i32
    %c0_i32_15 = arith.constant 0 : i32
    %21 = arith.cmpi ne, %20, %c0_i32_15 : i32
    scf.if %21 {
      %c0_16 = arith.constant 0 : index
      %c0_17 = arith.constant 0 : index
      %22 = vector.load %arg9[%c0_16, %c0_17] : memref<8x32xf32, #tpu.memory_space<vmem>>, vector<8x32xf32>
      %c0_18 = arith.constant 0 : index
      %c0_19 = arith.constant 0 : index
      %23 = vector.load %arg6[%c0_18, %c0_19] : memref<32x32xf32, #tpu.memory_space<vmem>>, vector<32x32xf32>
      %cst_20 = arith.constant dense<0.000000e+00> : vector<8x32xf32>
      %24 = tpu.matmul %22, %23, %cst_20 {dimension_numbers = #tpu.dot_dimension_numbers<[1], [0], [0], [1], [0, 0, 1, 1], [], []>} : vector<8x32xf32>, vector<32x32xf32>, vector<8x32xf32> -> vector<8x32xf32>
      %c0_21 = arith.constant 0 : index
      %c0_22 = arith.constant 0 : index
      %25 = vector.load %arg7[%c0_21, %c0_22] : memref<1x32xf32, #tpu.memory_space<vmem>>, vector<1x32xf32>
      %26 = vector.broadcast %25 : vector<1x32xf32> to vector<8x32xf32>
      %27 = arith.addf %24, %26 : vector<8x32xf32>
      %cst_23 = arith.constant 0.000000e+00 : f32
      %28 = vector.broadcast %cst_23 : f32 to vector<8x32xf32>
      %29 = arith.maximumf %27, %28 : vector<8x32xf32>
      %c0_24 = arith.constant 0 : index
      %c0_25 = arith.constant 0 : index
      %c0_26 = arith.constant 0 : index
      %30 = vector.load %arg8[%c0_24, %c0_25, %c0_26] : memref<1x8x32xf32, #tpu.memory_space<vmem>>, vector<1x8x32xf32>
      %31 = vector.shape_cast %30 : vector<1x8x32xf32> to vector<8x32xf32>
      %32 = vector.shape_cast %29 : vector<8x32xf32> to vector<1x8x32xf32>
      tpu.vector_store %arg8[%c0_24, %c0_25, %c0_26], %32 {strides = array<i32>} : memref<1x8x32xf32, #tpu.memory_space<vmem>>, vector<1x8x32xf32>,
    } else {
    }
    return
  }
  func.func @transform_0(%arg0: i32, %arg1: i32, %arg2: i32) -> (i32, i32, i32) {
    %c0_i32 = arith.constant 0 : i32
    %c0_i32_0 = arith.constant 0 : i32
    return %arg0, %arg2, %c0_i32 : i32, i32, i32
  }
  func.func @transform_1(%arg0: i32, %arg1: i32, %arg2: i32) -> (i32, i32, i32) {
    %c0_i32 = arith.constant 0 : i32
    return %arg0, %arg2, %arg1 : i32, i32, i32
  }
  func.func @transform_2(%arg0: i32, %arg1: i32, %arg2: i32) -> (i32, i32, i32, i32) {
    %c0_i32 = arith.constant 0 : i32
    %c0_i32_0 = arith.constant 0 : i32
    return %arg0, %arg2, %arg1, %c0_i32 : i32, i32, i32, i32
  }
  func.func @transform_3(%arg0: i32, %arg1: i32, %arg2: i32) -> (i32, i32) {
    %c0_i32 = arith.constant 0 : i32
    %c0_i32_0 = arith.constant 0 : i32
    %c0_i32_1 = arith.constant 0 : i32
    return %c0_i32, %c0_i32_0 : i32, i32
  }
  func.func @transform_4(%arg0: i32, %arg1: i32, %arg2: i32) -> (i32, i32) {
    %c0_i32 = arith.constant 0 : i32
    %c0_i32_0 = arith.constant 0 : i32
    %c0_i32_1 = arith.constant 0 : i32
    return %c0_i32, %c0_i32_0 : i32, i32
  }
  func.func @transform_5(%arg0: i32, %arg1: i32, %arg2: i32) -> (i32, i32, i32) {
    %c0_i32 = arith.constant 0 : i32
    %c0_i32_0 = arith.constant 0 : i32
    return %arg0, %arg1, %c0_i32 : i32, i32, i32
  }
}

</mosaic_0001>

<llo_original>
// kernel: tpu_custom_call.1
$region0: #{tpu_custom_call.1}
  #allocation0 [shape = 'u32[]', space=smem, size = 0x4, offset = 0x4, fixed_abs, tag = 'smem constant byte address 0x4 - core index']
  #allocation1 [shape = 'u32[72,128]{1,0:T(1,128)}', space=vmem, size = 0x9000, scoped, tag = 'internal scratch']
  #allocation2 [shape = 'f32[8,32]{1,0:T(8,128)}', space=vmem, size = 0x1000, scoped, tag = 'scratch operand']
  %s0 = inlined_call_operand.hbm [shape: f32[2,8,32], index: 0, kind: input, shape index: {}]
  %s1 = inlined_call_operand.hbm [shape: f32[2,8,8], index: 1, kind: input, shape index: {}]
  %s2 = inlined_call_operand.hbm [shape: f32[2,8,8,32], index: 2, kind: input, shape index: {}]
  %s3 = inlined_call_operand.hbm [shape: f32[32,32], index: 3, kind: input, shape index: {}]
  %s4 = inlined_call_operand.vmem [shape: f32[1,32], index: 4, kind: input, shape index: {}]
  %s5 = inlined_call_operand.hbm [shape: f32[2,8,32], index: 5, kind: output, shape index: {}]
  %s6 = sld [smem:[#allocation0]]
  $region77: #{tpu_custom_call.1} parent=0
    _
  %s8 = ssub.s32 1, %s6
  %s9 = scalar_select 0, %s8, %s6
  $region1: #{tpu_custom_call.1} parent=0
    #allocation3 [shape = 'u8[8192]{0}', space=vmem, size = 0x2000, scoped, tag = 'input window, operand 0']
    #allocation4 [shape = 's32[2]{0}', space=sflag, size = 0x8, scoped, tag = 'scoped memory for tpu_custom_call.1']
    #allocation5 [shape = 's32[2]{0}', space=sflag, size = 0x8, scoped, tag = 'scoped memory for tpu_custom_call.1']
    #allocation6 [shape = 'u8[8192]{0}', space=vmem, size = 0x2000, scoped, tag = 'input window, operand 1']
    #allocation7 [shape = 's32[2]{0}', space=sflag, size = 0x8, scoped, tag = 'scoped memory for tpu_custom_call.1']
    #allocation8 [shape = 'u8[65536]{0}', space=vmem, size = 0x10000, scoped, tag = 'input window, operand 2']
    #allocation9 [shape = 'u8[16384]{0}', space=vmem, size = 0x4000, scoped, tag = 'input window, operand 3, single buffered']
    #allocation10 [shape = 's32[1]{0}', space=sflag, size = 0x4, scoped, tag = 'scoped memory for tpu_custom_call.1']
    #allocation11 [shape = 'u8[8192]{0}', space=vmem, size = 0x2000, scoped, tag = 'output window, operand 0']
    %10 = vsyncpa [#allocation4], 0
    %s11 = scalar_lea.sflag [#allocation4], 1
    %12 = vsyncpa %s11, 0
    %13 = vsyncpa [#allocation7], 0
    %s14 = scalar_lea.sflag [#allocation7], 1
    %15 = vsyncpa %s14, 0
    %16 = vsyncpa [#allocation10], 0
    %17 = vsyncpa [#allocation5], 0
    %s18 = scalar_lea.sflag [#allocation5], 1
    %19 = vsyncpa %s18, 0
    loop: start=0, step=1, limit=4
    $region2: #{tpu_custom_call.1} parent=1 // loop_pre_header
      _
    $region3: #{tpu_custom_call.1} parent=1 // loop_header
      %s21 = sphi 0, %s25
      %p22 = scmp.ge.s32.totalorder %s21, 4
      %s28 = sphi 0, %s47
      %s29 = sphi 0, %s43
      %s30 = sphi 0, %s39
      %s31 = sphi 0, %s28
      %s32 = sphi 0, %s29
      %s33 = sphi 0, %s30
      %s34 = sphi 0, %s31
      %s35 = sphi 0, %s32
      %s36 = sphi 0, %s33
      %s52 = sphi 0, %s54
      %s55 = sphi 0, %s52
      %s56 = sphi 0, %s55
      %s72 = sphi 0, %s56
      %s82 = sphi 0, %s84
      %s85 = sphi 0, %s82
      %s86 = sphi 0, %s85
      %s102 = sphi 0, %s86
      %s112 = sphi 0, %s114
      %s115 = sphi 0, %s112
      %s116 = sphi 0, %s115
      %s132 = sphi 0, %s116
      %s136 = sphi 0, %s136
      %s138 = sphi 0, %s136
      %s139 = sphi 0, %s138
      %s153 = sphi 0, %s139
      %s157 = sphi 0, %s157
      %s159 = sphi 0, %s157
      %s160 = sphi 0, %s159
      %s174 = sphi 0, %s160
      %s182 = sphi 0, %s184
      %s185 = sphi 0, %s182
      %s186 = sphi 0, %s185
      %s202 = sphi 0, %s186
    $region4: #{tpu_custom_call.1} parent=1 // loop_header_branch
      %24 = sbr.rel (%p22) target = $region8
    $region5: #{tpu_custom_call.1} parent=1 // loop_body
      %s26 = ssub.s32 %s21, 1
      %s27 = ssub.s32 %s21, 2
      %s37 = sadd.s32 1, %s30
      %p38 = scmp.ge.s32.totalorder %s37, 1
      %s39 = scalar_select %p38, 0, %s37
      %s40 = sadd.s32 1, %s29
      %s41 = scalar_select %p38, %s40, %s29
      %p42 = scmp.ge.s32.totalorder %s41, 1
      %s43 = scalar_select %p42, 0, %s41
      %s44 = sadd.s32 1, %s28
      %s45 = scalar_select %p42, %s44, %s28
      %p46 = scmp.ge.s32.totalorder %s45, 2
      %s47 = scalar_select %p46, 0, %s45
      %s48 = ssub.s32 %s28, %s47
      %s49 = ssub.s32 %s30, %s39
      %s50 = sor.u32 %s48, %s49
      %p51 = scmp.eq.s32.totalorder %s50, 0
      %s53 = sadd.s32 %s52, 1
      %s54 = scalar_select %p51, %s52, %s53
      %p57 = pneg %p51
      %p58 = scmp.eq.s32.totalorder %s21, 1
      %p59 = por %p57, %p58
      %p60 = scmp.ne.s32.totalorder %s52, %s55
      %p61 = scmp.eq.s32.totalorder %s21, 0
      %p62 = por %p60, %p61
      %p63 = scmp.ne.s32.totalorder %s52, %s55
      %p64 = scmp.eq.s32.totalorder %s26, 1
      %p65 = por %p63, %p64
      %p66 = scmp.ne.s32.totalorder %s55, %s56
      %p67 = scmp.eq.s32.totalorder %s26, 0
      %p68 = por %p66, %p67
      %p69 = scmp.ne.s32.totalorder %s55, %s56
      %p70 = scmp.eq.s32.totalorder %s27, 1
      %p71 = por %p69, %p70
      %p73 = scmp.ne.s32.totalorder %s56, %s72
      %p74 = scmp.eq.s32.totalorder %s27, 0
      %p75 = por %p73, %p74
      %s76 = ssub.s32 %s28, %s47
      %s77 = ssub.s32 %s30, %s39
      %s78 = sor.u32 %s76, %s77
      %s79 = ssub.s32 %s29, %s43
      %s80 = sor.u32 %s78, %s79
      %p81 = scmp.eq.s32.totalorder %s80, 0
      %s83 = sadd.s32 %s82, 1
      %s84 = scalar_select %p81, %s82, %s83
      %p87 = pneg %p81
      %p88 = scmp.eq.s32.totalorder %s21, 1
      %p89 = por %p87, %p88
      %p90 = scmp.ne.s32.totalorder %s82, %s85
      %p91 = scmp.eq.s32.totalorder %s21, 0
      %p92 = por %p90, %p91
      %p93 = scmp.ne.s32.totalorder %s82, %s85
      %p94 = scmp.eq.s32.totalorder %s26, 1
      %p95 = por %p93, %p94
      %p96 = scmp.ne.s32.totalorder %s85, %s86
      %p97 = scmp.eq.s32.totalorder %s26, 0
      %p98 = por %p96, %p97
      %p99 = scmp.ne.s32.totalorder %s85, %s86
      %p100 = scmp.eq.s32.totalorder %s27, 1
      %p101 = por %p99, %p100
      %p103 = scmp.ne.s32.totalorder %s86, %s102
      %p104 = scmp.eq.s32.totalorder %s27, 0
      %p105 = por %p103, %p104
      %s106 = ssub.s32 %s28, %s47
      %s107 = ssub.s32 %s30, %s39
      %s108 = sor.u32 %s106, %s107
      %s109 = ssub.s32 %s29, %s43
      %s110 = sor.u32 %s108, %s109
      %p111 = scmp.eq.s32.totalorder %s110, 0
      %s113 = sadd.s32 %s112, 1
      %s114 = scalar_select %p111, %s112, %s113
      %p117 = pneg %p111
      %p118 = scmp.eq.s32.totalorder %s21, 1
      %p119 = por %p117, %p118
      %p120 = scmp.ne.s32.totalorder %s112, %s115
      %p121 = scmp.eq.s32.totalorder %s21, 0
      %p122 = por %p120, %p121
      %p123 = scmp.ne.s32.totalorder %s112, %s115
      %p124 = scmp.eq.s32.totalorder %s26, 1
      %p125 = por %p123, %p124
      %p126 = scmp.ne.s32.totalorder %s115, %s116
      %p127 = scmp.eq.s32.totalorder %s26, 0
      %p128 = por %p126, %p127
      %p129 = scmp.ne.s32.totalorder %s115, %s116
      %p130 = scmp.eq.s32.totalorder %s27, 1
      %p131 = por %p129, %p130
      %p133 = scmp.ne.s32.totalorder %s116, %s132
      %p134 = scmp.eq.s32.totalorder %s27, 0
      %p135 = por %p133, %p134
      %s137 = sadd.s32 %s136, 1
      %p140 = scmp.eq.s32.totalorder %s21, 1
      %p141 = scmp.ne.s32.totalorder %s136, %s138
      %p142 = scmp.eq.s32.totalorder %s21, 0
      %p143 = por %p141, %p142
      %p144 = scmp.ne.s32.totalorder %s136, %s138
      %p145 = scmp.eq.s32.totalorder %s26, 1
      %p146 = por %p144, %p145
      %p147 = scmp.ne.s32.totalorder %s138, %s139
      %p148 = scmp.eq.s32.totalorder %s26, 0
      %p149 = por %p147, %p148
      %p150 = scmp.ne.s32.totalorder %s138, %s139
      %p151 = scmp.eq.s32.totalorder %s27, 1
      %p152 = por %p150, %p151
      %p154 = scmp.ne.s32.totalorder %s139, %s153
      %p155 = scmp.eq.s32.totalorder %s27, 0
      %p156 = por %p154, %p155
      %s158 = sadd.s32 %s157, 1
      %p161 = scmp.eq.s32.totalorder %s21, 1
      %p162 = scmp.ne.s32.totalorder %s157, %s159
      %p163 = scmp.eq.s32.totalorder %s21, 0
      %p164 = por %p162, %p163
      %p165 = scmp.ne.s32.totalorder %s157, %s159
      %p166 = scmp.eq.s32.totalorder %s26, 1
      %p167 = por %p165, %p166
      %p168 = scmp.ne.s32.totalorder %s159, %s160
      %p169 = scmp.eq.s32.totalorder %s26, 0
      %p170 = por %p168, %p169
      %p171 = scmp.ne.s32.totalorder %s159, %s160
      %p172 = scmp.eq.s32.totalorder %s27, 1
      %p173 = por %p171, %p172
      %p175 = scmp.ne.s32.totalorder %s160, %s174
      %p176 = scmp.eq.s32.totalorder %s27, 0
      %p177 = por %p175, %p176
      %s178 = ssub.s32 %s28, %s47
      %s179 = ssub.s32 %s29, %s43
      %s180 = sor.u32 %s178, %s179
      %p181 = scmp.eq.s32.totalorder %s180, 0
      %s183 = sadd.s32 %s182, 1
      %s184 = scalar_select %p181, %s182, %s183
      %p187 = pneg %p181
      %p188 = scmp.eq.s32.totalorder %s21, 1
      %p189 = por %p187, %p188
      %p190 = scmp.ne.s32.totalorder %s182, %s185
      %p191 = scmp.eq.s32.totalorder %s21, 0
      %p192 = por %p190, %p191
      %p193 = scmp.ne.s32.totalorder %s182, %s185
      %p194 = scmp.eq.s32.totalorder %s26, 1
      %p195 = por %p193, %p194
      %p196 = scmp.ne.s32.totalorder %s185, %s186
      %p197 = scmp.eq.s32.totalorder %s26, 0
      %p198 = por %p196, %p197
      %p199 = scmp.ne.s32.totalorder %s185, %s186
      %p200 = scmp.eq.s32.totalorder %s27, 1
      %p201 = por %p199, %p200
      %p203 = scmp.ne.s32.totalorder %s186, %s202
      %p204 = scmp.eq.s32.totalorder %s27, 0
      %p205 = por %p203, %p204
      %p206 = scmp.le.s32.totalorder 1, %s21
      %p207 = scmp.lt.s32.totalorder %s21, 3
      %p208 = pnand %p206, %p207
      %p209 = pneg %p208
      // Predicated region
      $region9: #{tpu_custom_call.1} parent=5 // pred_check
        _
      $region10: #{tpu_custom_call.1} parent=5 // pred_check_branch
        %211 = sbr.rel (%p208) target = $region12
      $region11: #{tpu_custom_call.1} parent=5 // pred_region
        %s212 = ssub.s32 %s21, 1
        // Predicated region
        $region13: #{tpu_custom_call.1} parent=11 // pred_check
          %p213 = pneg %p149
        $region14: #{tpu_custom_call.1} parent=11 // pred_check_branch
          %215 = sbr.rel (%p213) target = $region16
        $region15: #{tpu_custom_call.1} parent=11 // pred_region
          %217 = vsyncadd [#allocation10], 0
          %s218 = sshll.u32 %s3, 4
          %s219 = int_to_ptr.hbm [resolvable:$true] %s218
          %s220 = sshll.u32 [#allocation9], 4
          %s221 = int_to_ptr.vmem [resolvable:$true] %s220
          %226 = dma.hbm_to_vmem [thread:$0]  %s219, 512, %s221, [#allocation10], 128, 128, 8
        $region16: #{tpu_custom_call.1} parent=11 // pred_fallthru
          _
        // Predicated region
        $region17: #{tpu_custom_call.1} parent=11 // pred_check
          %p227 = pneg %p170
        $region18: #{tpu_custom_call.1} parent=11 // pred_check_branch
          %229 = sbr.rel (%p227) target = $region20
        $region19: #{tpu_custom_call.1} parent=11 // pred_region
          _
        $region20: #{tpu_custom_call.1} parent=11 // pred_fallthru
          _
      $region12: #{tpu_custom_call.1} parent=5 // pred_fallthru
        _
      %p230 = scmp.lt.s32.totalorder %s21, 2
      // Predicated region
      $region21: #{tpu_custom_call.1} parent=5 // pred_check
        %p231 = pneg %p230
      $region22: #{tpu_custom_call.1} parent=5 // pred_check_branch
        %233 = sbr.rel (%p231) target = $region24
      $region23: #{tpu_custom_call.1} parent=5 // pred_region
        // Predicated region
        $region25: #{tpu_custom_call.1} parent=23 // pred_check
          %p234 = pneg %p62
        $region26: #{tpu_custom_call.1} parent=23 // pred_check_branch
          %236 = sbr.rel (%p234) target = $region28
        $region27: #{tpu_custom_call.1} parent=23 // pred_region
          %s237 = sand.u32 %s52, 1
          %s238 = scalar_lea.sflag [#allocation4], %s237
          %s239 = sand.u32 %s52, 1
          %s240 = smul.addr %s239, 8
          %s241 = scalar_lea.vmem [#allocation3], %s240
          %243 = vsyncadd %s238, 0
          %s244 = sadd.s32 %s30, %s28
          %s245 = smul.addr %s244, 8
          %s246 = scalar_lea.hbm %s0, %s245
          %s248 = sshll.u32 %s246, 4
          %s249 = int_to_ptr.hbm [resolvable:$true] %s248
          %s250 = sshll.u32 %s241, 4
          %s251 = int_to_ptr.vmem [resolvable:$true] %s250
          %253 = dma.hbm_to_vmem [thread:$0]  %s249, 128, %s251, %s238
        $region28: #{tpu_custom_call.1} parent=23 // pred_fallthru
          _
        // Predicated region
        $region29: #{tpu_custom_call.1} parent=23 // pred_check
          %p254 = pneg %p92
        $region30: #{tpu_custom_call.1} parent=23 // pred_check_branch
          %256 = sbr.rel (%p254) target = $region32
        $region31: #{tpu_custom_call.1} parent=23 // pred_region
          %s257 = sand.u32 %s21, 1
          %s258 = scalar_lea.sflag [#allocation7], %s257
          %s259 = sand.u32 %s82, 1
          %s260 = smul.addr %s259, 8
          %s261 = scalar_lea.vmem [#allocation6], %s260
          %263 = vsyncadd %s258, 0
          %s264 = sadd.s32 %s29, %s30
          %s265 = sadd.s32 %s264, %s28
          %s266 = smul.addr %s265, 8
          %s267 = scalar_lea.hbm %s1, %s266
          %s269 = sshll.u32 %s267, 4
          %s270 = int_to_ptr.hbm [resolvable:$true] %s269
          %s271 = sshll.u32 %s261, 4
          %s272 = int_to_ptr.vmem [resolvable:$true] %s271
          %274 = dma.hbm_to_vmem [thread:$0]  %s270, 128, %s272, %s258
        $region32: #{tpu_custom_call.1} parent=23 // pred_fallthru
          _
        // Predicated region
        $region33: #{tpu_custom_call.1} parent=23 // pred_check
          %p275 = pneg %p122
        $region34: #{tpu_custom_call.1} parent=23 // pred_check_branch
          %277 = sbr.rel (%p275) target = $region36
        $region35: #{tpu_custom_call.1} parent=23 // pred_region
          %s278 = sand.u32 %s21, 1
          %s279 = scalar_lea.sflag [#allocation7], %s278
          %s280 = sand.u32 %s112, 1
          %s281 = smul.addr %s280, 64
          %s282 = scalar_lea.vmem [#allocation8], %s281
          %s283 = smul.u32 8, %s30
          %285 = vsyncadd %s279, 0
          %s286 = sadd.s32 %s29, %s283
          %s287 = smul.addr %s28, 8
          %s288 = sadd.s32 %s286, %s287
          %s289 = smul.addr %s288, 8
          %s290 = scalar_lea.hbm %s2, %s289
          %s291 = sshll.u32 %s290, 4
          %s292 = int_to_ptr.hbm [resolvable:$true] %s291
          %s293 = sshll.u32 %s282, 4
          %s294 = int_to_ptr.vmem [resolvable:$true] %s293
          %299 = dma.hbm_to_vmem [thread:$0]  %s292, 1024, %s294, %s279, 128, 128, 8
        $region36: #{tpu_custom_call.1} parent=23 // pred_fallthru
          _
      $region24: #{tpu_custom_call.1} parent=5 // pred_fallthru
        _
      %p300 = scmp.le.s32.totalorder 1, %s21
      %p301 = scmp.lt.s32.totalorder %s21, 3
      %p302 = pnand %p300, %p301
      %p303 = pneg %p302
      // Predicated region
      $region37: #{tpu_custom_call.1} parent=5 // pred_check
        _
      $region38: #{tpu_custom_call.1} parent=5 // pred_check_branch
        %305 = sbr.rel (%p302) target = $region40
      $region39: #{tpu_custom_call.1} parent=5 // pred_region
        %s306 = ssub.s32 %s21, 1
        %s307 = sand.u32 %s55, 1
        %s308 = scalar_lea.sflag [#allocation4], %s307
        %s309 = sand.u32 %s55, 1
        %s310 = smul.addr %s309, 8
        %s311 = scalar_lea.vmem [#allocation3], %s310
        // Predicated region
        $region41: #{tpu_custom_call.1} parent=39 // pred_check
          %p312 = pneg %p68
        $region42: #{tpu_custom_call.1} parent=39 // pred_check_branch
          %314 = sbr.rel (%p312) target = $region44
        $region43: #{tpu_custom_call.1} parent=39 // pred_region
          %316 = dma.done %s308, 128
        $region44: #{tpu_custom_call.1} parent=39 // pred_fallthru
          _
        %s317 = sand.u32 %s26, 1
        %s318 = scalar_lea.sflag [#allocation7], %s317
        %s319 = sand.u32 %s85, 1
        %s320 = smul.addr %s319, 8
        %s321 = scalar_lea.vmem [#allocation6], %s320
        // Predicated region
        $region45: #{tpu_custom_call.1} parent=39 // pred_check
          %p322 = pneg %p98
        $region46: #{tpu_custom_call.1} parent=39 // pred_check_branch
          %324 = sbr.rel (%p322) target = $region48
        $region47: #{tpu_custom_call.1} parent=39 // pred_region
          %326 = dma.done %s318, 128
        $region48: #{tpu_custom_call.1} parent=39 // pred_fallthru
          _
        %s327 = sand.u32 %s26, 1
        %s328 = scalar_lea.sflag [#allocation7], %s327
        %s329 = sand.u32 %s115, 1
        %s330 = smul.addr %s329, 64
        %s331 = scalar_lea.vmem [#allocation8], %s330
        // Predicated region
        $region49: #{tpu_custom_call.1} parent=39 // pred_check
          %p332 = pneg %p128
        $region50: #{tpu_custom_call.1} parent=39 // pred_check_branch
          %334 = sbr.rel (%p332) target = $region52
        $region51: #{tpu_custom_call.1} parent=39 // pred_region
          %336 = dma.done %s328, 1024
        $region52: #{tpu_custom_call.1} parent=39 // pred_fallthru
          _
        // Predicated region
        $region53: #{tpu_custom_call.1} parent=39 // pred_check
          %p337 = pneg %p149
        $region54: #{tpu_custom_call.1} parent=39 // pred_check_branch
          %339 = sbr.rel (%p337) target = $region56
        $region55: #{tpu_custom_call.1} parent=39 // pred_region
          %341 = dma.done [#allocation10], 512
        $region56: #{tpu_custom_call.1} parent=39 // pred_fallthru
          _
        %s342 = sand.u32 %s55, 1
        %s343 = scalar_lea.sflag [#allocation4], %s342
        %s344 = sand.u32 %s55, 1
        %s345 = smul.addr %s344, 8
        %s346 = scalar_lea.vmem [#allocation3], %s345
        %p347 = pneg %p68
        %p348 = pneg %p65
        %s349 = sand.u32 %s26, 1
        %s350 = scalar_lea.sflag [#allocation7], %s349
        %s351 = sand.u32 %s85, 1
        %s352 = smul.addr %s351, 8
        %s353 = scalar_lea.vmem [#allocation6], %s352
        %p354 = pneg %p98
        %p355 = pneg %p95
        %s356 = sand.u32 %s26, 1
        %s357 = scalar_lea.sflag [#allocation7], %s356
        %s358 = sand.u32 %s115, 1
        %s359 = smul.addr %s358, 64
        %s360 = scalar_lea.vmem [#allocation8], %s359
        %p361 = pneg %p128
        %p362 = pneg %p125
        %p363 = pneg %p149
        %p364 = pneg %p146
        %p365 = pneg %p170
        %p366 = pneg %p167
        %p367 = pneg %p198
        %p368 = pneg %p195
        %s369 = sand.u32 %s185, 1
        %s370 = scalar_lea.sflag [#allocation5], %s369
        %s371 = sand.u32 %s185, 1
        %s372 = smul.addr %s371, 8
        %s373 = scalar_lea.vmem [#allocation11], %s372
        %s374 = smul.u32 8, %s33
        %p375 = scmp.eq.s32.totalorder %s33, 0
        // Predicated region
        $region57: #{tpu_custom_call.1} parent=39 // pred_check
          %p376 = pneg %p375
        $region58: #{tpu_custom_call.1} parent=39 // pred_check_branch
          %378 = sbr.rel (%p376) target = $region60
        $region59: #{tpu_custom_call.1} parent=39 // pred_region
          %vm379 = vcmask 261120
          %380 = vst.msk [vmem:[#allocation2] sm:$0xff] %vm379, 0.0
        $region60: #{tpu_custom_call.1} parent=39 // pred_fallthru
          _
        %v381 = vld [vmem:[%s311] sm:$0xff]
        %v382 = vld [vmem:[%s321] sm:$0xff]
        %v383 = vld [vmem:[%s331] sm:$0xff]
        %v384 = vld [vmem:[%s331 + $0x8] sm:$0xff]
        %v385 = vld [vmem:[%s331 + $0x10] sm:$0xff]
        %v386 = vld [vmem:[%s331 + $0x18] sm:$0xff]
        %v387 = vld [vmem:[%s331 + $0x20] sm:$0xff]
        %v388 = vld [vmem:[%s331 + $0x28] sm:$0xff]
        %v389 = vld [vmem:[%s331 + $0x30] sm:$0xff]
        %v390 = vld [vmem:[%s331 + $0x38] sm:$0xff]
        %v392 = vrot.slane %v381, 1
        %v393 = vrot.slane %v381, 2
        %v394 = vrot.slane %v381, 3
        %v395 = vrot.slane %v381, 4
        %v396 = vrot.slane %v381, 5
        %v397 = vrot.slane %v381, 6
        %v398 = vrot.slane %v381, 7
        %v399 = vperm.slane %v381, 0
        %v400 = vperm.slane %v392, 0
        %v401 = vperm.slane %v393, 0
        %v402 = vperm.slane %v394, 0
        %v403 = vperm.slane %v395, 0
        %v404 = vperm.slane %v396, 0
        %v405 = vperm.slane %v397, 0
        %v406 = vperm.slane %v398, 0
        %v415 = vadd.f32 %v399, %v383
        %v416 = vadd.f32 %v400, %v384
        %v417 = vadd.f32 %v401, %v385
        %v418 = vadd.f32 %v402, %v386
        %v419 = vadd.f32 %v403, %v387
        %v420 = vadd.f32 %v404, %v388
        %v421 = vadd.f32 %v405, %v389
        %v422 = vadd.f32 %v406, %v390
        %v423 = vld [vmem:[#allocation2] sm:$0xff]
        %v424 = vperm.slane %v382, 0
        %v425 = vlaneseq
        %v426 = vshrl.u32 %v425, 7
        %428 = vset.pattern.permute.xlu0 %v426
        %429 = vperm.xlu0 %428, %v424
        %v430 = vpop.permute.xlu0 %429
        %v431 = vperm.slane %v382, 1
        %v432 = vlaneseq
        %v433 = vshrl.u32 %v432, 7
        %435 = vset.pattern.permute.xlu0 %v433
        %436 = vperm.xlu0 %435, %v431
        %v437 = vpop.permute.xlu0 %436
        %v438 = vperm.slane %v382, 2
        %v439 = vlaneseq
        %v440 = vshrl.u32 %v439, 7
        %442 = vset.pattern.permute.xlu0 %v440
        %443 = vperm.xlu0 %442, %v438
        %v444 = vpop.permute.xlu0 %443
        %v445 = vperm.slane %v382, 3
        %v446 = vlaneseq
        %v447 = vshrl.u32 %v446, 7
        %449 = vset.pattern.permute.xlu0 %v447
        %450 = vperm.xlu0 %449, %v445
        %v451 = vpop.permute.xlu0 %450
        %v452 = vperm.slane %v382, 4
        %v453 = vlaneseq
        %v454 = vshrl.u32 %v453, 7
        %456 = vset.pattern.permute.xlu0 %v454
        %457 = vperm.xlu0 %456, %v452
        %v458 = vpop.permute.xlu0 %457
        %v459 = vperm.slane %v382, 5
        %v460 = vlaneseq
        %v461 = vshrl.u32 %v460, 7
        %463 = vset.pattern.permute.xlu0 %v461
        %464 = vperm.xlu0 %463, %v459
        %v465 = vpop.permute.xlu0 %464
        %v466 = vperm.slane %v382, 6
        %v467 = vlaneseq
        %v468 = vshrl.u32 %v467, 7
        %470 = vset.pattern.permute.xlu0 %v468
        %471 = vperm.xlu0 %470, %v466
        %v472 = vpop.permute.xlu0 %471
        %v473 = vperm.slane %v382, 7
        %v474 = vlaneseq
        %v475 = vshrl.u32 %v474, 7
        %477 = vset.pattern.permute.xlu0 %v475
        %478 = vperm.xlu0 %477, %v473
        %v479 = vpop.permute.xlu0 %478
        %v480 = vmul.f32 %v430, %v415
        %v481 = vmul.f32 %v437, %v416
        %v482 = vmul.f32 %v444, %v417
        %v483 = vmul.f32 %v451, %v418
        %v484 = vmul.f32 %v458, %v419
        %v485 = vmul.f32 %v465, %v420
        %v486 = vmul.f32 %v472, %v421
        %v487 = vmul.f32 %v479, %v422
        %vm488 = vcmask 261120
        %v489 = vsel %vm488, %v480, 0.0
        %v490 = vsel %vm488, %v481, 0.0
        %v491 = vadd.f32 %v489, %v490
        %v492 = vsel %vm488, %v482, 0.0
        %v493 = vadd.f32 %v491, %v492
        %v494 = vsel %vm488, %v483, 0.0
        %v495 = vadd.f32 %v493, %v494
        %v496 = vsel %vm488, %v484, 0.0
        %v497 = vadd.f32 %v495, %v496
        %v498 = vsel %vm488, %v485, 0.0
        %v499 = vadd.f32 %v497, %v498
        %v500 = vsel %vm488, %v486, 0.0
        %v501 = vadd.f32 %v499, %v500
        %v502 = vsel %vm488, %v487, 0.0
        %v503 = vadd.f32 %v501, %v502
        %v504 = vadd.f32 %v423, %v503
        %505 = vst.msk [vmem:[#allocation2] sm:$0xff] %vm488, %v504
        // Predicated region
        $region61: #{tpu_custom_call.1} parent=39 // pred_check
          %p506 = pneg %p375
        $region62: #{tpu_custom_call.1} parent=39 // pred_check_branch
          %508 = sbr.rel (%p506) target = $region64
        $region63: #{tpu_custom_call.1} parent=39 // pred_region
          %v509 = vld [vmem:[#allocation2] sm:$0xff]
          %v510 = vld [vmem:[#allocation9] sm:$0xff]
          %v511 = vld [vmem:[#allocation9 + $0x8] sm:$0xff]
          %v512 = vld [vmem:[#allocation9 + $0x10] sm:$0xff]
          %v513 = vld [vmem:[#allocation9 + $0x18] sm:$0xff]
          %v514 = vld [vmem:[%s4] sm:$0x1]
          %v516 = vperm.slane %v514, 0
          %v519 = vsel %vm488, %v509, 0
          %521 = vmatpush.msra.mxu0 0.0
          %522 = vmatpush.msra.mxu0 0.0
          %523 = vmatpush.msra.mxu0 0.0
          %524 = vmatpush.msra.mxu0 0.0
          %525 = vmatpush.msra.mxu0 0.0
          %526 = vmatpush.msra.mxu0 0.0
          %527 = vmatpush.msra.mxu0 0.0
          %528 = vmatpush.msra.mxu0 0.0
          %529 = vmatpush.msra.mxu0 0.0
          %530 = vmatpush.msra.mxu0 0.0
          %531 = vmatpush.msra.mxu0 0.0
          %532 = vmatpush.msra.mxu0 0.0
          %533 = vmatpush.msra.mxu0 %v513
          %534 = vmatpush.msra.mxu0 %v512
          %535 = vmatpush.msra.mxu0 %v511
          %536 = vmatpush.msra.mxu0 %v510
          %537 = vmatmul.f32.gmra.mxu0 %v519
          %v538 = vpop.f32.mrf.mxu0
          %v539 = vadd.f32 %v516, %v538
          %540 = vdwg.mxu0
          %v541 = vmax.f32 %v539, 0.0
          %542 = vst.msk [vmem:[%s373] sm:$0xff] %vm488, %v541
        $region64: #{tpu_custom_call.1} parent=39 // pred_fallthru
          _
        %s543 = sand.u32 %s185, 1
        %s544 = scalar_lea.sflag [#allocation5], %s543
        %s545 = sand.u32 %s185, 1
        %s546 = smul.addr %s545, 8
        %s547 = scalar_lea.vmem [#allocation11], %s546
        // Predicated region
        $region65: #{tpu_custom_call.1} parent=39 // pred_check
          %p548 = pneg %p195
        $region66: #{tpu_custom_call.1} parent=39 // pred_check_branch
          %550 = sbr.rel (%p548) target = $region68
        $region67: #{tpu_custom_call.1} parent=39 // pred_region
          %552 = vsyncadd %s544, 0
          %s553 = sadd.s32 %s32, %s31
          %s554 = smul.addr %s553, 8
          %s555 = scalar_lea.hbm %s5, %s554
          %s557 = sshll.u32 %s547, 4
          %s558 = int_to_ptr.vmem [resolvable:$true] %s557
          %s559 = sshll.u32 %s555, 4
          %s560 = int_to_ptr.hbm [resolvable:$true] %s559
          %562 = dma.vmem_to_hbm [thread:$0]  %s558, 128, %s560, %s544
        $region68: #{tpu_custom_call.1} parent=39 // pred_fallthru
          _
      $region40: #{tpu_custom_call.1} parent=5 // pred_fallthru
        _
      %p563 = scmp.le.s32.totalorder 2, %s21
      // Predicated region
      $region69: #{tpu_custom_call.1} parent=5 // pred_check
        %p564 = pneg %p563
      $region70: #{tpu_custom_call.1} parent=5 // pred_check_branch
        %566 = sbr.rel (%p564) target = $region72
      $region71: #{tpu_custom_call.1} parent=5 // pred_region
        %s567 = ssub.s32 %s21, 2
        // Predicated region
        $region73: #{tpu_custom_call.1} parent=71 // pred_check
          %p568 = pneg %p201
        $region74: #{tpu_custom_call.1} parent=71 // pred_check_branch
          %570 = sbr.rel (%p568) target = $region76
        $region75: #{tpu_custom_call.1} parent=71 // pred_region
          %s571 = sand.u32 %s186, 1
          %s572 = scalar_lea.sflag [#allocation5], %s571
          %s573 = sand.u32 %s186, 1
          %s574 = smul.addr %s573, 8
          %s575 = scalar_lea.vmem [#allocation11], %s574
          %577 = dma.done %s572, 128
        $region76: #{tpu_custom_call.1} parent=71 // pred_fallthru
          _
      $region72: #{tpu_custom_call.1} parent=5 // pred_fallthru
        _
    $region6: #{tpu_custom_call.1} parent=1 // loop_footer
      %s25 = sadd.s32 1, %s21
    $region7: #{tpu_custom_call.1} parent=1 // loop_footer_branch
      %20 = sbr.rel target = $region3
    $region8: #{tpu_custom_call.1} parent=1 // loop_exit
      _
    %578 = vsyncpa [#allocation4], 1
    %s579 = scalar_lea.sflag [#allocation4], 1
    %580 = vsyncpa %s579, 1
    %581 = vsyncpa [#allocation7], 1
    %s582 = scalar_lea.sflag [#allocation7], 1
    %583 = vsyncpa %s582, 1
    %584 = vsyncpa [#allocation10], 1
    %585 = vsyncpa [#allocation5], 1
    %s586 = scalar_lea.sflag [#allocation5], 1
    %587 = vsyncpa %s586, 1

</llo_original>
